<compile_context>
chip_gen: v7x
topology: tpu7x:2x2x1
jax: 0.10.0
libtpu: 0.0.40
codegen_flags: <defaults>
</compile_context>

<pallas_src>
from functools import partial

import jax
import jax.numpy as jnp
from jax import lax
from jax.experimental import pallas as pl
from jax.experimental.pallas import tpu as pltpu


def _round_up(v, mult):
    return ((v + mult - 1) // mult) * mult


def lsplm_kernel(x_ref, w_ref, b_ref, o_ref, m_sc, l_sc, *, batch):
    """Fused LS-PLM forward, experts-on-sublanes / batch-on-lanes layout.

    Grid: (pass, batch_tile). pass 0 = softmax stats, pass 1 = normalize + combine.

    x_ref: (TB, n)          natural-layout batch tile of x.
    w_ref: (2*m_pad, n)     rows [0, m_pad)        = W_sm (zero-padded rows)
                            rows [m_pad, 2*m_pad)  = W_lg (zero-padded rows)
    b_ref: (2*m_pad, 1)     matching biases; padded logistic rows get -1e9 so
                            sigmoid == 0 and they contribute exactly zero.
    o_ref: (1, TB)          lane-dense output tile.
    m_sc:  (m_pad, 1) f32   running per-expert max over the batch (scratch).
    l_sc:  (m_pad, 1) f32   running per-expert exp-sum over the batch (scratch).
    """
    p = pl.program_id(0)            # 0: stats pass, 1: normalize/combine pass
    t = pl.program_id(1)            # batch tile index
    m_pad = w_ref.shape[0] // 2
    tb = x_ref.shape[0]

    # One fused MXU pass for both branches; contraction n<->n flips batch onto lanes
    # without any wrapper-side transpose. f32 accumulate regardless of input dtype.
    z = lax.dot_general(
        w_ref[...], x_ref[...],
        dimension_numbers=(((1,), (1,)), ((), ())),
        preferred_element_type=jnp.float32)                       # (2*m_pad, TB)
    z = z + b_ref[...]                                            # bias: VPU broadcast add

    # Valid-lane mask for the (possibly ragged) last batch tile. The dim=0 softmax
    # couples every batch column through the per-expert max/denominator, so padded
    # lanes must contribute nothing (and any garbage/NaN in OOB rows must be masked).
    lane = lax.broadcasted_iota(jnp.int32, (1, tb), 1)
    valid = (t * tb + lane) < batch                               # (1, TB) bool

    z_sm = jnp.where(valid, z[:m_pad, :], jnp.float32(-1e30))     # masked softmax logits
    z_lg = z[m_pad:, :]

    @pl.when(p == 0)
    def _stats_pass():
        @pl.when(t == 0)
        def _init():
            m_sc[...] = jnp.full_like(m_sc, -1e30)
            l_sc[...] = jnp.zeros_like(l_sc)

        tile_max = jnp.max(z_sm, axis=-1, keepdims=True)          # (m_pad, 1), XLU reduce
        m_new = jnp.maximum(m_sc[...], tile_max)
        l_sc[...] = (l_sc[...] * jnp.exp(m_sc[...] - m_new)
                     + jnp.sum(jnp.exp(z_sm - m_new), axis=-1, keepdims=True))
        m_sc[...] = m_new
        # Keep the output tile defined during pass 0; pass 1 fully overwrites it.
        o_ref[...] = jnp.zeros_like(o_ref)

    @pl.when(p == 1)
    def _combine_pass():
        # Exact normalization (no approx reciprocal): denom is only (m_pad, 1).
        softmax_out = jnp.exp(z_sm - m_sc[...]) / l_sc[...]       # (m_pad, TB)
        logistic_out = jax.nn.sigmoid(z_lg)                       # padded rows == 0
        comb = jnp.sum(softmax_out * logistic_out, axis=0, keepdims=True)   # (1, TB)
        o_ref[...] = jax.nn.sigmoid(comb)


def pack_params(w_softmax, b_softmax, w_logistic, b_logistic, dtype=jnp.float32):
    """One-time packing of PyTorch-layout params (W: (m, n), b: (m,)).

    Returns (w_packed, b_packed):
      w_packed: (2*m_pad, n) in `dtype` (use jnp.bfloat16 on v6e/v7x to halve the
                x/w DMA and feed the MXU its native format),
      b_packed: (2*m_pad, 1) f32 (bias is added after the f32-accumulated dot).
    Padded logistic rows get bias -1e9 -> sigmoid == 0 -> zero mixture contribution.
    """
    m, n = w_softmax.shape
    m_pad = _round_up(max(m, 1), 8)
    w = jnp.zeros((2 * m_pad, n), jnp.float32)
    w = w.at[:m].set(w_softmax.astype(jnp.float32))
    w = w.at[m_pad:m_pad + m].set(w_logistic.astype(jnp.float32))
    b = jnp.zeros((2 * m_pad, 1), jnp.float32)
    b = b.at[:m, 0].set(b_softmax.astype(jnp.float32))
    b = b.at[m_pad:m_pad + m, 0].set(b_logistic.astype(jnp.float32))
    b = b.at[m_pad + m:, 0].set(jnp.float32(-1e9))
    return w.astype(dtype), b


@partial(jax.jit, static_argnames=("tile_b",))
def ls_plm_forward(x, w_packed, b_packed, tile_b=128):
    """x: (B, n), w_packed/b_packed from pack_params. Returns (B,) f32."""
    batch, n = x.shape
    two_m_pad, n_w = w_packed.shape
    assert n_w == n
    m_pad = two_m_pad // 2

    # Cast x to the packed weight dtype only (bf16 on v6e/v7x halves the dominant DMA);
    # all post-dot elementwise math stays f32 (v5e-safe).
    x = x.astype(w_packed.dtype)

    tb = min(tile_b, batch)           # small batches: one full-array tile (no padding)
    n_bt = pl.cdiv(batch, tb)
    b_pad = n_bt * tb

    kernel = partial(lsplm_kernel, batch=batch)

    grid_spec = pltpu.PrefetchScalarGridSpec(
        num_scalar_prefetch=0,
        grid=(2, n_bt),               # (pass, batch_tile); tiles are double-buffered
        in_specs=[
            pl.BlockSpec((tb, n), lambda p, t: (t, 0)),            # x: streamed per tile
            pl.BlockSpec((two_m_pad, n), lambda p, t: (0, 0)),     # weights: resident
            pl.BlockSpec((two_m_pad, 1), lambda p, t: (0, 0)),     # bias: resident
        ],
        out_specs=pl.BlockSpec((1, tb), lambda p, t: (0, t)),      # lane-dense output
        scratch_shapes=[pltpu.VMEM((m_pad, 1), jnp.float32),       # running max
                        pltpu.VMEM((m_pad, 1), jnp.float32)],      # running exp-sum
    )

    out = pl.pallas_call(
        kernel,
        out_shape=jax.ShapeDtypeStruct((1, b_pad), jnp.float32),
        grid_spec=grid_spec,
        compiler_params=pltpu.CompilerParams(
            # Both axes are sequential dependencies (running stats / pass ordering).
            dimension_semantics=("arbitrary", "arbitrary")),
    )(x, w_packed, b_packed)
    return out[0, :batch]


def ls_plm_reference(x, w_sm, b_sm, w_lg, b_lg):
    z_sm = x @ w_sm.T + b_sm
    sm = jax.nn.softmax(z_sm, axis=0)
    lg = jax.nn.sigmoid(x @ w_lg.T + b_lg)
    return jax.nn.sigmoid(jnp.sum(sm * lg, axis=1))


# TODO(synk): training-side methods (fit, l1Loss, l2Loss, optimizer, BCELoss) are not
# part of the forward pass and are intentionally not implemented as kernels.

if __name__ == "__main__":
    # Shapes consistent with the module: n features, m=12 mixture experts,
    # batch around the module's default batchsize=50 plus a multi-tile ragged case.
    n, m = 4, 12

    key = jax.random.PRNGKey(0)
    kx, k1, k2, k3, k4 = jax.random.split(key, 5)

    # Deterministic init mimicking nn.Linear defaults: U(-1/sqrt(n), 1/sqrt(n)).
    bound = float(1.0 / (n ** 0.5))
    w_softmax = jax.random.uniform(k1, (m, n), jnp.float32, -bound, bound)
    b_softmax = jax.random.uniform(k2, (m,), jnp.float32, -bound, bound)
    w_logistic = jax.random.uniform(k3, (m, n), jnp.float32, -bound, bound)
    b_logistic = jax.random.uniform(k4, (m,), jnp.float32, -bound, bound)

    # Pack once (hoisted out of the per-call hot path).
    w_f32, b_f32 = pack_params(w_softmax, b_softmax, w_logistic, b_logistic)
    w_bf16, b_bf16 = pack_params(w_softmax, b_softmax, w_logistic, b_logistic,
                                 dtype=jnp.bfloat16)

    # B=300: 3 batch tiles of 128 with a ragged last tile (exercises the masked
    # dim=0 softmax accumulation). B=50: the module's default batchsize (single tile).
    for B in (300, 50):
        x = jax.random.normal(jax.random.fold_in(kx, B), (B, n), dtype=jnp.float32)
        ref = ls_plm_reference(x, w_softmax, b_softmax, w_logistic, b_logistic)

        out = jax.block_until_ready(ls_plm_forward(x, w_f32, b_f32))
        assert out.shape == (B,), out.shape
        assert jnp.allclose(out, ref, atol=1e-5, rtol=1e-5), (B, out, ref)

        # bf16 input/weight variant (v6e/v7x bandwidth win); math stays f32.
        out_bf16 = jax.block_until_ready(ls_plm_forward(x, w_bf16, b_bf16))
        assert out_bf16.shape == (B,), out_bf16.shape
        assert jnp.allclose(out_bf16, ref, atol=3e-2, rtol=3e-2), (B, out_bf16, ref)

    print("KERNEL_OK")
</pallas_src>

<mosaic_0001>
module attributes {stable_mosaic.version = 11 : i64} {
  func.func @lsplm_kernel(%arg0: i32, %arg1: i32, %arg2: memref<128x4xf32, #tpu.memory_space<vmem>>, %arg3: memref<32x4xf32, #tpu.memory_space<vmem>>, %arg4: memref<32x1xf32, #tpu.memory_space<vmem>>, %arg5: memref<1x128xf32, #tpu.memory_space<vmem>>, %arg6: memref<16x1xf32, #tpu.memory_space<vmem>>, %arg7: memref<16x1xf32, #tpu.memory_space<vmem>>) attributes {dimension_semantics = [#tpu.dimension_semantics<arbitrary>, #tpu.dimension_semantics<arbitrary>], iteration_bounds = array<i64: 2, 3>, scalar_prefetch = 0 : i64, scratch_operands = 2 : i64, tpu.core_type = #tpu.core_type<tc>, window_params = [{transform_indices = @transform_0, window_bounds = array<i64: 128, 4>}, {pipeline_mode = #tpu.pipeline_mode<synchronous>, transform_indices = @transform_1, window_bounds = array<i64: 32, 4>}, {pipeline_mode = #tpu.pipeline_mode<synchronous>, transform_indices = @transform_2, window_bounds = array<i64: 32, 1>}, {transform_indices = @transform_3, window_bounds = array<i64: 1, 128>}]} {
    %c0 = arith.constant 0 : index
    %c0_0 = arith.constant 0 : index
    %0 = vector.load %arg3[%c0, %c0_0] : memref<32x4xf32, #tpu.memory_space<vmem>>, vector<32x4xf32>
    %c0_1 = arith.constant 0 : index
    %c0_2 = arith.constant 0 : index
    %1 = vector.load %arg2[%c0_1, %c0_2] : memref<128x4xf32, #tpu.memory_space<vmem>>, vector<128x4xf32>
    %cst = arith.constant dense<0.000000e+00> : vector<32x128xf32>
    %2 = tpu.matmul %0, %1, %cst {dimension_numbers = #tpu.dot_dimension_numbers<[1], [1], [0], [0], [0, 0, 1, 0], [], []>} : vector<32x4xf32>, vector<128x4xf32>, vector<32x128xf32> -> vector<32x128xf32>
    %c0_3 = arith.constant 0 : index
    %c0_4 = arith.constant 0 : index
    %3 = vector.load %arg4[%c0_3, %c0_4] : memref<32x1xf32, #tpu.memory_space<vmem>>, vector<32x1xf32>
    %4 = vector.broadcast %3 : vector<32x1xf32> to vector<32x128xf32>
    %5 = arith.addf %2, %4 : vector<32x128xf32>
    %6 = tpu.iota {dimensions = array<i32: 1>} : vector<1x128xi32>
    %c128_i32 = arith.constant 128 : i32
    %7 = arith.muli %arg1, %c128_i32 : i32
    %8 = vector.broadcast %7 : i32 to vector<1x128xi32>
    %9 = arith.addi %8, %6 : vector<1x128xi32>
    %c300_i32 = arith.constant 300 : i32
    %10 = vector.broadcast %c300_i32 : i32 to vector<1x128xi32>
    %11 = arith.cmpi slt, %9, %10 : vector<1x128xi32>
    %12 = vector.extract_strided_slice %5 {offsets = [0, 0], sizes = [16, 128], strides = [1, 1]} : vector<32x128xf32> to vector<16x128xf32>
    %cst_5 = arith.constant -1.000000e+30 : f32
    %13 = vector.shape_cast %11 : vector<1x128xi1> to vector<1x128xi1>
    %14 = vector.broadcast %13 : vector<1x128xi1> to vector<16x128xi1>
    %15 = vector.broadcast %cst_5 : f32 to vector<16x128xf32>
    %16 = arith.select %14, %12, %15 : vector<16x128xi1>, vector<16x128xf32>
    %17 = vector.extract_strided_slice %5 {offsets = [16, 0], sizes = [16, 128], strides = [1, 1]} : vector<32x128xf32> to vector<16x128xf32>
    %c0_i32 = arith.constant 0 : i32
    %18 = arith.cmpi eq, %arg0, %c0_i32 : i32
    %19 = arith.extui %18 : i1 to i32
    %c0_i32_6 = arith.constant 0 : i32
    %20 = arith.cmpi ne, %19, %c0_i32_6 : i32
    scf.if %20 {
      %c0_i32_8 = arith.constant 0 : i32
      %24 = arith.cmpi eq, %arg1, %c0_i32_8 : i32
      %25 = arith.extui %24 : i1 to i32
      %c0_i32_9 = arith.constant 0 : i32
      %26 = arith.cmpi ne, %25, %c0_i32_9 : i32
      scf.if %26 {
        %cst_25 = arith.constant -1.000000e+30 : f32
        %46 = vector.broadcast %cst_25 : f32 to vector<16x1xf32>
        %c0_26 = arith.constant 0 : index
        %c0_27 = arith.constant 0 : index
        %47 = vector.load %arg6[%c0_26, %c0_27] : memref<16x1xf32, #tpu.memory_space<vmem>>, vector<16x1xf32>
        tpu.vector_store %arg6[%c0_26, %c0_27], %46 {strides = array<i32>} : memref<16x1xf32, #tpu.memory_space<vmem>>, vector<16x1xf32>,
        %cst_28 = arith.constant 0.000000e+00 : f32
        %48 = vector.broadcast %cst_28 : f32 to vector<16x1xf32>
        %c0_29 = arith.constant 0 : index
        %c0_30 = arith.constant 0 : index
        %49 = vector.load %arg7[%c0_29, %c0_30] : memref<16x1xf32, #tpu.memory_space<vmem>>, vector<16x1xf32>
        tpu.vector_store %arg7[%c0_29, %c0_30], %48 {strides = array<i32>} : memref<16x1xf32, #tpu.memory_space<vmem>>, vector<16x1xf32>,
      } else {
      }
      %cst_10 = arith.constant dense<0xFF800000> : vector<16xf32>
      %27 = vector.multi_reduction <maximumf>, %16, %cst_10 [1] : vector<16x128xf32> to vector<16xf32>
      %28 = vector.shape_cast %27 : vector<16xf32> to vector<16x1xf32>
      %c0_11 = arith.constant 0 : index
      %c0_12 = arith.constant 0 : index
      %29 = vector.load %arg6[%c0_11, %c0_12] : memref<16x1xf32, #tpu.memory_space<vmem>>, vector<16x1xf32>
      %30 = arith.maximumf %29, %28 : vector<16x1xf32>
      %c0_13 = arith.constant 0 : index
      %c0_14 = arith.constant 0 : index
      %31 = vector.load %arg7[%c0_13, %c0_14] : memref<16x1xf32, #tpu.memory_space<vmem>>, vector<16x1xf32>
      %c0_15 = arith.constant 0 : index
      %c0_16 = arith.constant 0 : index
      %32 = vector.load %arg6[%c0_15, %c0_16] : memref<16x1xf32, #tpu.memory_space<vmem>>, vector<16x1xf32>
      %33 = arith.subf %32, %30 : vector<16x1xf32>
      %34 = math.exp %33 : vector<16x1xf32>
      %35 = arith.mulf %31, %34 : vector<16x1xf32>
      %36 = vector.broadcast %30 : vector<16x1xf32> to vector<16x128xf32>
      %37 = arith.subf %16, %36 : vector<16x128xf32>
      %38 = math.exp %37 : vector<16x128xf32>
      %cst_17 = arith.constant dense<0.000000e+00> : vector<16xf32>
      %39 = vector.multi_reduction <add>, %38, %cst_17 [1] : vector<16x128xf32> to vector<16xf32>
      %40 = vector.shape_cast %39 : vector<16xf32> to vector<16x1xf32>
      %41 = arith.addf %35, %40 : vector<16x1xf32>
      %c0_18 = arith.constant 0 : index
      %c0_19 = arith.constant 0 : index
      %42 = vector.load %arg7[%c0_18, %c0_19] : memref<16x1xf32, #tpu.memory_space<vmem>>, vector<16x1xf32>
      tpu.vector_store %arg7[%c0_18, %c0_19], %41 {strides = array<i32>} : memref<16x1xf32, #tpu.memory_space<vmem>>, vector<16x1xf32>,
      %c0_20 = arith.constant 0 : index
      %c0_21 = arith.constant 0 : index
      %43 = vector.load %arg6[%c0_20, %c0_21] : memref<16x1xf32, #tpu.memory_space<vmem>>, vector<16x1xf32>
      tpu.vector_store %arg6[%c0_20, %c0_21], %30 {strides = array<i32>} : memref<16x1xf32, #tpu.memory_space<vmem>>, vector<16x1xf32>,
      %cst_22 = arith.constant 0.000000e+00 : f32
      %44 = vector.broadcast %cst_22 : f32 to vector<1x128xf32>
      %c0_23 = arith.constant 0 : index
      %c0_24 = arith.constant 0 : index
      %45 = vector.load %arg5[%c0_23, %c0_24] : memref<1x128xf32, #tpu.memory_space<vmem>>, vector<1x128xf32>
      tpu.vector_store %arg5[%c0_23, %c0_24], %44 {strides = array<i32>} : memref<1x128xf32, #tpu.memory_space<vmem>>, vector<1x128xf32>,
    } else {
    }
    %c1_i32 = arith.constant 1 : i32
    %21 = arith.cmpi eq, %arg0, %c1_i32 : i32
    %22 = arith.extui %21 : i1 to i32
    %c0_i32_7 = arith.constant 0 : i32
    %23 = arith.cmpi ne, %22, %c0_i32_7 : i32
    scf.if %23 {
      %c0_8 = arith.constant 0 : index
      %c0_9 = arith.constant 0 : index
      %24 = vector.load %arg6[%c0_8, %c0_9] : memref<16x1xf32, #tpu.memory_space<vmem>>, vector<16x1xf32>
      %25 = vector.broadcast %24 : vector<16x1xf32> to vector<16x128xf32>
      %26 = arith.subf %16, %25 : vector<16x128xf32>
      %27 = math.exp %26 : vector<16x128xf32>
      %c0_10 = arith.constant 0 : index
      %c0_11 = arith.constant 0 : index
      %28 = vector.load %arg7[%c0_10, %c0_11] : memref<16x1xf32, #tpu.memory_space<vmem>>, vector<16x1xf32>
      %29 = vector.broadcast %28 : vector<16x1xf32> to vector<16x128xf32>
      %30 = arith.divf %27, %29 : vector<16x128xf32>
      %31 = arith.negf %17 : vector<16x128xf32>
      %32 = math.exp %31 : vector<16x128xf32>
      %cst_12 = arith.constant 1.000000e+00 : f32
      %33 = vector.broadcast %cst_12 : f32 to vector<16x128xf32>
      %34 = arith.addf %33, %32 : vector<16x128xf32>
      %35 = arith.divf %33, %34 : vector<16x128xf32>
      %36 = arith.mulf %30, %35 : vector<16x128xf32>
      %cst_13 = arith.constant dense<0.000000e+00> : vector<128xf32>
      %37 = vector.multi_reduction <add>, %36, %cst_13 [0] : vector<16x128xf32> to vector<128xf32>
      %38 = vector.shape_cast %37 : vector<128xf32> to vector<1x128xf32>
      %39 = arith.negf %38 : vector<1x128xf32>
      %40 = math.exp %39 : vector<1x128xf32>
      %cst_14 = arith.constant 1.000000e+00 : f32
      %41 = vector.broadcast %cst_14 : f32 to vector<1x128xf32>
      %42 = arith.addf %41, %40 : vector<1x128xf32>
      %43 = arith.divf %41, %42 : vector<1x128xf32>
      %c0_15 = arith.constant 0 : index
      %c0_16 = arith.constant 0 : index
      %44 = vector.load %arg5[%c0_15, %c0_16] : memref<1x128xf32, #tpu.memory_space<vmem>>, vector<1x128xf32>
      tpu.vector_store %arg5[%c0_15, %c0_16], %43 {strides = array<i32>} : memref<1x128xf32, #tpu.memory_space<vmem>>, vector<1x128xf32>,
    } else {
    }
    return
  }
  func.func @transform_0(%arg0: i32, %arg1: i32) -> (i32, i32) {
    %c0_i32 = arith.constant 0 : i32
    %c0_i32_0 = arith.constant 0 : i32
    return %arg1, %c0_i32 : i32, i32
  }
  func.func @transform_1(%arg0: i32, %arg1: i32) -> (i32, i32) {
    %c0_i32 = arith.constant 0 : i32
    %c0_i32_0 = arith.constant 0 : i32
    %c0_i32_1 = arith.constant 0 : i32
    return %c0_i32, %c0_i32_0 : i32, i32
  }
  func.func @transform_2(%arg0: i32, %arg1: i32) -> (i32, i32) {
    %c0_i32 = arith.constant 0 : i32
    %c0_i32_0 = arith.constant 0 : i32
    %c0_i32_1 = arith.constant 0 : i32
    return %c0_i32, %c0_i32_0 : i32, i32
  }
  func.func @transform_3(%arg0: i32, %arg1: i32) -> (i32, i32) {
    %c0_i32 = arith.constant 0 : i32
    %c0_i32_0 = arith.constant 0 : i32
    return %c0_i32, %arg1 : i32, i32
  }
}

</mosaic_0001>

<llo_original>
// kernel: ls_plm_forward.1
$region0: #{ls_plm_forward.1}
  #allocation0 [shape = 'u32[]', space=smem, size = 0x4, offset = 0x4, fixed_abs, tag = 'smem constant byte address 0x4 - core index']
  #allocation1 [shape = 'u32[144,128]{1,0:T(1,128)}', space=vmem, size = 0x12000, scoped, tag = 'internal scratch']
  #allocation2 [shape = 'f32[16,1]{1,0:T(8,128)}', space=vmem, size = 0x2000, scoped, tag = 'scratch operand']
  #allocation3 [shape = 'f32[16,1]{1,0:T(8,128)}', space=vmem, size = 0x2000, scoped, tag = 'scratch operand']
  %s0 = inlined_call_operand.vmem [shape: f32[300,4], index: 0, kind: input, shape index: {}]
  %s1 = inlined_call_operand.vmem [shape: f32[32,4], index: 1, kind: input, shape index: {}]
  %s2 = inlined_call_operand.vmem [shape: f32[32,1], index: 2, kind: input, shape index: {}]
  %s3 = inlined_call_operand.vmem [shape: f32[1,384], index: 3, kind: output, shape index: {}]
  %s4 = sld [smem:[#allocation0]]
  $region57: #{ls_plm_forward.1} parent=0
    _
  %s6 = ssub.s32 1, %s4
  %s7 = scalar_select 0, %s6, %s4
  loop: start=0, step=1, limit=8
  $region2: #{ls_plm_forward.1} parent=0 // loop_pre_header
    _
  $region3: #{ls_plm_forward.1} parent=0 // loop_header
    %s9 = sphi 0, %s13
    %p10 = scmp.ge.s32.totalorder %s9, 8
    %s16 = sphi 0, %s28
    %s17 = sphi 0, %s24
    %s18 = sphi 0, %s16
    %s19 = sphi 0, %s17
    %s20 = sphi 0, %s18
    %s21 = sphi 0, %s19
    %s31 = sphi 0, %s33
    %s34 = sphi 0, %s31
    %s35 = sphi 0, %s34
    %s51 = sphi 0, %s35
    %s55 = sphi 0, %s55
    %s57 = sphi 0, %s55
    %s58 = sphi 0, %s57
    %s72 = sphi 0, %s58
    %s76 = sphi 0, %s76
    %s78 = sphi 0, %s76
    %s79 = sphi 0, %s78
    %s93 = sphi 0, %s79
    %s99 = sphi 0, %s101
    %s102 = sphi 0, %s99
    %s103 = sphi 0, %s102
    %s119 = sphi 0, %s103
  $region4: #{ls_plm_forward.1} parent=0 // loop_header_branch
    %12 = sbr.rel (%p10) target = $region8
  $region5: #{ls_plm_forward.1} parent=0 // loop_body
    %s14 = ssub.s32 %s9, 1
    %s15 = ssub.s32 %s9, 2
    %s22 = sadd.s32 1, %s17
    %p23 = scmp.ge.s32.totalorder %s22, 3
    %s24 = scalar_select %p23, 0, %s22
    %s25 = sadd.s32 1, %s16
    %s26 = scalar_select %p23, %s25, %s16
    %p27 = scmp.ge.s32.totalorder %s26, 2
    %s28 = scalar_select %p27, 0, %s26
    %s29 = ssub.s32 %s17, %s24
    %p30 = scmp.eq.s32.totalorder %s29, 0
    %s32 = sadd.s32 %s31, 1
    %s33 = scalar_select %p30, %s31, %s32
    %p36 = pneg %p30
    %p37 = scmp.eq.s32.totalorder %s9, 5
    %p38 = por %p36, %p37
    %p39 = scmp.ne.s32.totalorder %s31, %s34
    %p40 = scmp.eq.s32.totalorder %s9, 0
    %p41 = por %p39, %p40
    %p42 = scmp.ne.s32.totalorder %s31, %s34
    %p43 = scmp.eq.s32.totalorder %s14, 5
    %p44 = por %p42, %p43
    %p45 = scmp.ne.s32.totalorder %s34, %s35
    %p46 = scmp.eq.s32.totalorder %s14, 0
    %p47 = por %p45, %p46
    %p48 = scmp.ne.s32.totalorder %s34, %s35
    %p49 = scmp.eq.s32.totalorder %s15, 5
    %p50 = por %p48, %p49
    %p52 = scmp.ne.s32.totalorder %s35, %s51
    %p53 = scmp.eq.s32.totalorder %s15, 0
    %p54 = por %p52, %p53
    %s56 = sadd.s32 %s55, 1
    %p59 = scmp.eq.s32.totalorder %s9, 5
    %p60 = scmp.ne.s32.totalorder %s55, %s57
    %p61 = scmp.eq.s32.totalorder %s9, 0
    %p62 = por %p60, %p61
    %p63 = scmp.ne.s32.totalorder %s55, %s57
    %p64 = scmp.eq.s32.totalorder %s14, 5
    %p65 = por %p63, %p64
    %p66 = scmp.ne.s32.totalorder %s57, %s58
    %p67 = scmp.eq.s32.totalorder %s14, 0
    %p68 = por %p66, %p67
    %p69 = scmp.ne.s32.totalorder %s57, %s58
    %p70 = scmp.eq.s32.totalorder %s15, 5
    %p71 = por %p69, %p70
    %p73 = scmp.ne.s32.totalorder %s58, %s72
    %p74 = scmp.eq.s32.totalorder %s15, 0
    %p75 = por %p73, %p74
    %s77 = sadd.s32 %s76, 1
    %p80 = scmp.eq.s32.totalorder %s9, 5
    %p81 = scmp.ne.s32.totalorder %s76, %s78
    %p82 = scmp.eq.s32.totalorder %s9, 0
    %p83 = por %p81, %p82
    %p84 = scmp.ne.s32.totalorder %s76, %s78
    %p85 = scmp.eq.s32.totalorder %s14, 5
    %p86 = por %p84, %p85
    %p87 = scmp.ne.s32.totalorder %s78, %s79
    %p88 = scmp.eq.s32.totalorder %s14, 0
    %p89 = por %p87, %p88
    %p90 = scmp.ne.s32.totalorder %s78, %s79
    %p91 = scmp.eq.s32.totalorder %s15, 5
    %p92 = por %p90, %p91
    %p94 = scmp.ne.s32.totalorder %s79, %s93
    %p95 = scmp.eq.s32.totalorder %s15, 0
    %p96 = por %p94, %p95
    %s97 = ssub.s32 %s17, %s24
    %p98 = scmp.eq.s32.totalorder %s97, 0
    %s100 = sadd.s32 %s99, 1
    %s101 = scalar_select %p98, %s99, %s100
    %p104 = pneg %p98
    %p105 = scmp.eq.s32.totalorder %s9, 5
    %p106 = por %p104, %p105
    %p107 = scmp.ne.s32.totalorder %s99, %s102
    %p108 = scmp.eq.s32.totalorder %s9, 0
    %p109 = por %p107, %p108
    %p110 = scmp.ne.s32.totalorder %s99, %s102
    %p111 = scmp.eq.s32.totalorder %s14, 5
    %p112 = por %p110, %p111
    %p113 = scmp.ne.s32.totalorder %s102, %s103
    %p114 = scmp.eq.s32.totalorder %s14, 0
    %p115 = por %p113, %p114
    %p116 = scmp.ne.s32.totalorder %s102, %s103
    %p117 = scmp.eq.s32.totalorder %s15, 5
    %p118 = por %p116, %p117
    %p120 = scmp.ne.s32.totalorder %s103, %s119
    %p121 = scmp.eq.s32.totalorder %s15, 0
    %p122 = por %p120, %p121
    %p123 = scmp.le.s32.totalorder 1, %s9
    %p124 = scmp.lt.s32.totalorder %s9, 7
    %p125 = pnand %p123, %p124
    %p126 = pneg %p125
    // Predicated region
    $region9: #{ls_plm_forward.1} parent=5 // pred_check
      _
    $region10: #{ls_plm_forward.1} parent=5 // pred_check_branch
      %128 = sbr.rel (%p125) target = $region12
    $region11: #{ls_plm_forward.1} parent=5 // pred_region
      %s129 = ssub.s32 %s9, 1
      // Predicated region
      $region13: #{ls_plm_forward.1} parent=11 // pred_check
        %p130 = pneg %p68
      $region14: #{ls_plm_forward.1} parent=11 // pred_check_branch
        %132 = sbr.rel (%p130) target = $region16
      $region15: #{ls_plm_forward.1} parent=11 // pred_region
        _
      $region16: #{ls_plm_forward.1} parent=11 // pred_fallthru
        _
      // Predicated region
      $region17: #{ls_plm_forward.1} parent=11 // pred_check
        %p133 = pneg %p89
      $region18: #{ls_plm_forward.1} parent=11 // pred_check_branch
        %135 = sbr.rel (%p133) target = $region20
      $region19: #{ls_plm_forward.1} parent=11 // pred_region
        _
      $region20: #{ls_plm_forward.1} parent=11 // pred_fallthru
        _
    $region12: #{ls_plm_forward.1} parent=5 // pred_fallthru
      _
    %p136 = scmp.lt.s32.totalorder %s9, 6
    // Predicated region
    $region21: #{ls_plm_forward.1} parent=5 // pred_check
      %p137 = pneg %p136
    $region22: #{ls_plm_forward.1} parent=5 // pred_check_branch
      %139 = sbr.rel (%p137) target = $region24
    $region23: #{ls_plm_forward.1} parent=5 // pred_region
      // Predicated region
      $region25: #{ls_plm_forward.1} parent=23 // pred_check
        %p140 = pneg %p41
      $region26: #{ls_plm_forward.1} parent=23 // pred_check_branch
        %142 = sbr.rel (%p140) target = $region28
      $region27: #{ls_plm_forward.1} parent=23 // pred_region
        %s143 = smul.u32 16, %s17
        %s144 = ssub.s32 38, %s143
        %p145 = scmp.lt.s32.totalorder %s144, 16
        %s146 = scalar_select %p145, %s144, 16
        %s147 = smul.u32 128, %s146
        %p148 = scmp.lt.s32.totalorder %s143, 37
        %s149 = scalar_select %p148, %s143, 37
        %s150 = smul.addr %s149, 8
        %s151 = scalar_lea.vmem %s0, %s150
        %s152 = smul.u32 16, %s17
        %s153 = ssub.s32 38, %s152
        %p154 = scmp.lt.s32.totalorder %s153, 16
        %s155 = scalar_select %p154, %s153, 16
        %s156 = smul.u32 128, %s155
      $region28: #{ls_plm_forward.1} parent=23 // pred_fallthru
        _
    $region24: #{ls_plm_forward.1} parent=5 // pred_fallthru
      _
    %p157 = scmp.le.s32.totalorder 1, %s9
    %p158 = scmp.lt.s32.totalorder %s9, 7
    %p159 = pnand %p157, %p158
    %p160 = pneg %p159
    // Predicated region
    $region29: #{ls_plm_forward.1} parent=5 // pred_check
      _
    $region30: #{ls_plm_forward.1} parent=5 // pred_check_branch
      %162 = sbr.rel (%p159) target = $region32
    $region31: #{ls_plm_forward.1} parent=5 // pred_region
      %s163 = ssub.s32 %s9, 1
      %s164 = smul.u32 16, %s19
      %s165 = ssub.s32 38, %s164
      %p166 = scmp.lt.s32.totalorder %s165, 16
      %s167 = scalar_select %p166, %s165, 16
      %s168 = smul.u32 128, %s167
      %p169 = scmp.lt.s32.totalorder %s164, 37
      %s170 = scalar_select %p169, %s164, 37
      %s171 = smul.addr %s170, 8
      %s172 = scalar_lea.vmem %s0, %s171
      %p173 = pneg %p47
      %p174 = pneg %p44
      %p175 = pneg %p68
      %p176 = pneg %p65
      %p177 = pneg %p89
      %p178 = pneg %p86
      %p179 = pneg %p115
      %p180 = pneg %p112
      %p181 = scmp.lt.s32.totalorder %s19, 2
      %s182 = scalar_select %p181, %s19, 2
      %s183 = scalar_lea.vmem %s3, %s182
      %s184 = smul.u32 16, %s19
      %s185 = ssub.s32 38, %s184
      %p186 = scmp.lt.s32.totalorder %s185, 16
      %s187 = scalar_select %p186, %s185, 16
      %s188 = smul.u32 128, %s187
      %p189 = scmp.lt.s32.totalorder %s184, 37
      %s190 = scalar_select %p189, %s184, 37
      %s191 = smul.addr %s190, 8
      %s192 = scalar_lea.vmem %s0, %s191
      %s193 = smul.u32 16, %s19
      %s194 = ssub.s32 38, %s193
      %p195 = scmp.lt.s32.totalorder %s194, 16
      %s196 = scalar_select %p195, %s194, 16
      %s197 = smul.u32 128, %s196
      %p198 = scmp.lt.s32.totalorder %s19, 2
      %s199 = scalar_select %p198, %s19, 2
      %s200 = scalar_lea.vmem %s3, %s199
      %v201 = vld [vmem:[%s1] sm:$0xff]
      %v202 = vld [vmem:[%s1 + $0x8] sm:$0xff]
      %v203 = vld [vmem:[%s1 + $0x10] sm:$0xff]
      %v204 = vld [vmem:[%s1 + $0x18] sm:$0xff]
      %v205 = vld [vmem:[%s192] sm:$0xff]
      %v206 = vld [vmem:[%s192 + $0x8] sm:$0xff]
      %v207 = vld [vmem:[%s192 + $0x10] sm:$0xff]
      %v208 = vld [vmem:[%s192 + $0x18] sm:$0xff]
      %v209 = vld [vmem:[%s192 + $0x20] sm:$0xff]
      %v210 = vld [vmem:[%s192 + $0x28] sm:$0xff]
      %v211 = vld [vmem:[%s192 + $0x30] sm:$0xff]
      %v212 = vld [vmem:[%s192 + $0x38] sm:$0xff]
      %v213 = vld [vmem:[%s192 + $0x40] sm:$0xff]
      %v214 = vld [vmem:[%s192 + $0x48] sm:$0xff]
      %v215 = vld [vmem:[%s192 + $0x50] sm:$0xff]
      %v216 = vld [vmem:[%s192 + $0x58] sm:$0xff]
      %v217 = vld [vmem:[%s192 + $0x60] sm:$0xff]
      %v218 = vld [vmem:[%s192 + $0x68] sm:$0xff]
      %v219 = vld [vmem:[%s192 + $0x70] sm:$0xff]
      %v220 = vld [vmem:[%s192 + $0x78] sm:$0xff]
      %v221 = vld [vmem:[%s2] sm:$0xff]
      %v222 = vld [vmem:[%s2 + $0x8] sm:$0xff]
      %v223 = vld [vmem:[%s2 + $0x10] sm:$0xff]
      %v224 = vld [vmem:[%s2 + $0x18] sm:$0xff]
      %226 = vset.pattern.permute.xlu0 0
      %227 = vperm.xlu0 %226, %v221
      %v228 = vpop.permute.xlu0 %227
      %231 = vset.pattern.permute.xlu0 0
      %232 = vperm.xlu0 %231, %v222
      %v233 = vpop.permute.xlu0 %232
      %236 = vset.pattern.permute.xlu0 0
      %237 = vperm.xlu0 %236, %v223
      %v238 = vpop.permute.xlu0 %237
      %241 = vset.pattern.permute.xlu0 0
      %242 = vperm.xlu0 %241, %v224
      %v243 = vpop.permute.xlu0 %242
      %vm245 = vcmask 31744
      %v247 = vsel %vm245, %v201, 0
      %v250 = vsel %vm245, %v202, 0
      %v253 = vsel %vm245, %v203, 0
      %v256 = vsel %vm245, %v204, 0
      %v259 = vsel %vm245, %v205, 0
      %v262 = vsel %vm245, %v206, 0
      %v265 = vsel %vm245, %v207, 0
      %v268 = vsel %vm245, %v208, 0
      %v271 = vsel %vm245, %v209, 0
      %v274 = vsel %vm245, %v210, 0
      %v277 = vsel %vm245, %v211, 0
      %v280 = vsel %vm245, %v212, 0
      %v283 = vsel %vm245, %v213, 0
      %v286 = vsel %vm245, %v214, 0
      %v289 = vsel %vm245, %v215, 0
      %v292 = vsel %vm245, %v216, 0
      %v295 = vsel %vm245, %v217, 0
      %v298 = vsel %vm245, %v218, 0
      %v301 = vsel %vm245, %v219, 0
      %v304 = vsel %vm245, %v220, 0
      %306 = vmatprep.subr.mxu0 0.0
      %307 = vmatpush1.xpose.msra.mxu0 %v259
      %308 = vmatprep.subr.mxu0 0.0
      %309 = vmatpush1.xpose.msra.mxu0 %v262
      %310 = vmatprep.subr.mxu0 0.0
      %311 = vmatpush1.xpose.msra.mxu0 %v265
      %312 = vmatprep.subr.mxu0 0.0
      %313 = vmatpush1.xpose.msra.mxu0 %v268
      %314 = vmatprep.subr.mxu0 0.0
      %315 = vmatpush1.xpose.msra.mxu0 %v271
      %316 = vmatprep.subr.mxu0 0.0
      %317 = vmatpush1.xpose.msra.mxu0 %v274
      %318 = vmatprep.subr.mxu0 0.0
      %319 = vmatpush1.xpose.msra.mxu0 %v277
      %320 = vmatprep.subr.mxu0 0.0
      %321 = vmatpush1.xpose.msra.mxu0 %v280
      %322 = vmatprep.subr.mxu0 0.0
      %323 = vmatpush1.xpose.msra.mxu0 %v283
      %324 = vmatprep.subr.mxu0 0.0
      %325 = vmatpush1.xpose.msra.mxu0 %v286
      %326 = vmatprep.subr.mxu0 0.0
      %327 = vmatpush1.xpose.msra.mxu0 %v289
      %328 = vmatprep.subr.mxu0 0.0
      %329 = vmatpush1.xpose.msra.mxu0 %v292
      %330 = vmatprep.subr.mxu0 0.0
      %331 = vmatpush1.xpose.msra.mxu0 %v295
      %332 = vmatprep.subr.mxu0 0.0
      %333 = vmatpush1.xpose.msra.mxu0 %v298
      %334 = vmatprep.subr.mxu0 0.0
      %335 = vmatpush1.xpose.msra.mxu0 %v301
      %336 = vmatprep.subr.mxu0 0.0
      %337 = vmatpush1.xpose.msra.mxu0 %v304
      %338 = vmatprep.subr.mxu0 0.0
      %339 = vmatpush1.xpose.msra.mxu0 0.0
      %340 = vmatprep.subr.mxu0 0.0
      %341 = vmatpush1.xpose.msra.mxu0 0.0
      %342 = vmatprep.subr.mxu0 0.0
      %343 = vmatpush1.xpose.msra.mxu0 0.0
      %344 = vmatprep.subr.mxu0 0.0
      %345 = vmatpush1.xpose.msra.mxu0 0.0
      %346 = vmatprep.subr.mxu0 0.0
      %347 = vmatpush1.xpose.msra.mxu0 0.0
      %348 = vmatprep.subr.mxu0 0.0
      %349 = vmatpush1.xpose.msra.mxu0 0.0
      %350 = vmatprep.subr.mxu0 0.0
      %351 = vmatpush1.xpose.msra.mxu0 0.0
      %352 = vmatprep.subr.mxu0 0.0
      %353 = vmatpush1.xpose.msra.mxu0 0.0
      %354 = vmatprep.subr.mxu0 0.0
      %355 = vmatpush1.xpose.msra.mxu0 0.0
      %356 = vmatprep.subr.mxu0 0.0
      %357 = vmatpush1.xpose.msra.mxu0 0.0
      %358 = vmatprep.subr.mxu0 0.0
      %359 = vmatpush1.xpose.msra.mxu0 0.0
      %360 = vmatprep.subr.mxu0 0.0
      %361 = vmatpush1.xpose.msra.mxu0 0.0
      %362 = vmatprep.subr.mxu0 0.0
      %363 = vmatpush1.xpose.msra.mxu0 0.0
      %364 = vmatprep.subr.mxu0 0.0
      %365 = vmatpush1.xpose.msra.mxu0 0.0
      %366 = vmatprep.subr.mxu0 0.0
      %367 = vmatpush1.xpose.msra.mxu0 0.0
      %368 = vmatprep.subr.mxu0 0.0
      %369 = vmatpush1.xpose.msra.mxu0 0.0
      %370 = vmatprep.mubr.f32.mxu0 0.0
      %371 = vmatmul.mubr.f32.gmra.mrb[0].mxu0 %v247
      %v372 = vpop.f32.mrb[0].mxu0
      %v373 = vadd.f32 %v228, %v372
      %v374 = vpop.f32.mrb[0].mxu0
      %375 = vmatprep.mubr.f32.mxu0 0.0
      %376 = vmatmul.mubr.f32.gmra.mrb[0].mxu0 %v250
      %v377 = vpop.f32.mrb[0].mxu0
      %v378 = vadd.f32 %v233, %v377
      %v379 = vpop.f32.mrb[0].mxu0
      %380 = vmatprep.mubr.f32.mxu0 0.0
      %381 = vmatmul.mubr.f32.gmra.mrb[0].mxu0 %v253
      %v382 = vpop.f32.mrb[0].mxu0
      %v383 = vadd.f32 %v238, %v382
      %v384 = vpop.f32.mrb[0].mxu0
      %385 = vmatprep.mubr.f32.mxu0 0.0
      %386 = vmatmul.mubr.f32.gmra.mrb[0].mxu0 %v256
      %v387 = vpop.f32.mrb[0].mxu0
      %v388 = vadd.f32 %v243, %v387
      %v389 = vpop.f32.mrb[0].mxu0
      %390 = vdwg.mxu0
      %v391 = vlaneseq
      %v392 = vand.u32 %v391, 127
      %s393 = smul.u32 %s19, 128
      %v394 = vstv %s393
      %v395 = vadd.s32 %v394, %v392
      %vm396 = vcmp.lt.s32.totalorder %v395, 300
      %v397 = vsel %vm396, 1, 0
      %vm398 = vcmp.eq.s32.totalorder %v397, 1
      %v399 = vsel %vm398, %v373, -1e+30
      %v400 = vsel %vm398, %v378, -1e+30
      %p401 = scmp.eq.s32.totalorder %s18, 0
      // Predicated region
      $region33: #{ls_plm_forward.1} parent=31 // pred_check
        %p402 = pneg %p401
      $region34: #{ls_plm_forward.1} parent=31 // pred_check_branch
        %404 = sbr.rel (%p402) target = $region36
      $region35: #{ls_plm_forward.1} parent=31 // pred_region
        %p405 = scmp.eq.s32.totalorder %s19, 0
        // Predicated region
        $region37: #{ls_plm_forward.1} parent=35 // pred_check
          %p406 = pneg %p405
        $region38: #{ls_plm_forward.1} parent=35 // pred_check_branch
          %408 = sbr.rel (%p406) target = $region40
        $region39: #{ls_plm_forward.1} parent=35 // pred_region
          %vm409 = vcmask 7168
          %410 = vst.msk [vmem:[#allocation2] sm:$0xff] %vm409, -1e+30
          %411 = vst.msk [vmem:[#allocation2 + $0x8] sm:$0xff] %vm409, -1e+30
          %412 = vst.msk [vmem:[#allocation3] sm:$0xff] %vm409, 0.0
          %413 = vst.msk [vmem:[#allocation3 + $0x8] sm:$0xff] %vm409, 0.0
        $region40: #{ls_plm_forward.1} parent=35 // pred_fallthru
          _
        %414 = vmax.xlane.f32.xlu0 %v399
        %v415 = vpop.xlane.xlu0 %414
        %416 = vmax.xlane.f32.xlu0 %v400
        %v417 = vpop.xlane.xlu0 %416
        %v418 = vld [vmem:[#allocation2] sm:$0xff]
        %v419 = vld [vmem:[#allocation2 + $0x8] sm:$0xff]
        %v420 = vmax.f32 %v418, %v415
        %v421 = vmax.f32 %v419, %v417
        %v422 = vld [vmem:[#allocation3] sm:$0xff]
        %v423 = vld [vmem:[#allocation3 + $0x8] sm:$0xff]
        %v424 = vsub.f32 %v418, %v420
        %v425 = vsub.f32 %v419, %v421
        %v426 = vmul.f32 %v424, 1.442695
        %v427 = vpow.pop %v426
        %v428 = vmul.f32 %v425, 1.442695
        %v429 = vpow.pop %v428
        %v430 = vmul.f32 %v422, %v427
        %v431 = vmul.f32 %v423, %v429
        %433 = vset.pattern.permute.xlu0 0
        %434 = vperm.xlu0 %433, %v420
        %v435 = vpop.permute.xlu0 %434
        %438 = vset.pattern.permute.xlu0 0
        %439 = vperm.xlu0 %438, %v421
        %v440 = vpop.permute.xlu0 %439
        %v442 = vsub.f32 %v399, %v435
        %v443 = vsub.f32 %v400, %v440
        %v444 = vmul.f32 %v442, 1.442695
        %v445 = vpow.pop %v444
        %v446 = vmul.f32 %v443, 1.442695
        %v447 = vpow.pop %v446
        %448 = vadd.xlane.f32.xlu0 %v445
        %v449 = vpop.xlane.xlu0 %448
        %450 = vadd.xlane.f32.xlu0 %v447
        %v451 = vpop.xlane.xlu0 %450
        %v452 = vadd.f32 %v430, %v449
        %v453 = vadd.f32 %v431, %v451
        %vm454 = vcmask 7168
        %455 = vst.msk [vmem:[#allocation3] sm:$0xff] %vm454, %v452
        %456 = vst.msk [vmem:[#allocation3 + $0x8] sm:$0xff] %vm454, %v453
        %457 = vst.msk [vmem:[#allocation2] sm:$0xff] %vm454, %v420
        %458 = vst.msk [vmem:[#allocation2 + $0x8] sm:$0xff] %vm454, %v421
        %459 = vst [vmem:[%s200] sm:$0x1] 0.0
      $region36: #{ls_plm_forward.1} parent=31 // pred_fallthru
        _
      %p460 = scmp.eq.s32.totalorder %s18, 1
      // Predicated region
      $region41: #{ls_plm_forward.1} parent=31 // pred_check
        %p461 = pneg %p460
      $region42: #{ls_plm_forward.1} parent=31 // pred_check_branch
        %463 = sbr.rel (%p461) target = $region44
      $region43: #{ls_plm_forward.1} parent=31 // pred_region
        %v464 = vld [vmem:[#allocation2] sm:$0xff]
        %v465 = vld [vmem:[#allocation2 + $0x8] sm:$0xff]
        %467 = vset.pattern.permute.xlu0 0
        %468 = vperm.xlu0 %467, %v464
        %v469 = vpop.permute.xlu0 %468
        %472 = vset.pattern.permute.xlu0 0
        %473 = vperm.xlu0 %472, %v465
        %v474 = vpop.permute.xlu0 %473
        %v476 = vsub.f32 %v399, %v469
        %v477 = vsub.f32 %v400, %v474
        %v478 = vmul.f32 %v476, 1.442695
        %v479 = vpow.pop %v478
        %v480 = vmul.f32 %v477, 1.442695
        %v481 = vpow.pop %v480
        %v482 = vld [vmem:[#allocation3] sm:$0xff]
        %v483 = vld [vmem:[#allocation3 + $0x8] sm:$0xff]
        %485 = vset.pattern.permute.xlu0 0
        %486 = vperm.xlu0 %485, %v482
        %v487 = vpop.permute.xlu0 %486
        %490 = vset.pattern.permute.xlu0 0
        %491 = vperm.xlu0 %490, %v483
        %v492 = vpop.permute.xlu0 %491
        %v494 = vrcp.pop %v487
        %v495 = vmul.f32 %v479, %v494
        %v496 = vrcp.pop %v492
        %v497 = vmul.f32 %v481, %v496
        %v498 = vxor.u32 %v383, 2147483648
        %v499 = vxor.u32 %v388, 2147483648
        %v500 = vmul.f32 %v498, 1.442695
        %v501 = vpow.pop %v500
        %v502 = vmul.f32 %v499, 1.442695
        %v503 = vpow.pop %v502
        %v504 = vadd.f32 %v501, 1.0
        %v505 = vadd.f32 %v503, 1.0
        %v506 = vrcp.pop %v504
        %v507 = vmul.f32 1.0, %v506
        %v508 = vrcp.pop %v505
        %v509 = vmul.f32 1.0, %v508
        %v510 = vmul.f32 %v495, %v507
        %v511 = vmul.f32 %v497, %v509
        %v512 = vadd.f32 %v510, %v511
        %v513 = vrot.slane %v512, 4
        %v514 = vadd.f32 %v512, %v513
        %v515 = vrot.slane %v514, 2
        %v516 = vadd.f32 %v514, %v515
        %v517 = vrot.slane %v516, 1
        %v518 = vadd.f32 %v516, %v517
        %v519 = vxor.u32 %v518, 2147483648
        %v520 = vmul.f32 %v519, 1.442695
        %v521 = vpow.pop %v520
        %v522 = vadd.f32 %v521, 1.0
        %v523 = vrcp.pop %v522
        %v524 = vmul.f32 1.0, %v523
        %525 = vst [vmem:[%s200] sm:$0x1] %v524
      $region44: #{ls_plm_forward.1} parent=31 // pred_fallthru
        _
      %p526 = scmp.lt.s32.totalorder %s19, 2
      %s527 = scalar_select %p526, %s19, 2
      %s528 = scalar_lea.vmem %s3, %s527
      // Predicated region
      $region45: #{ls_plm_forward.1} parent=31 // pred_check
        %p529 = pneg %p112
      $region46: #{ls_plm_forward.1} parent=31 // pred_check_branch
        %531 = sbr.rel (%p529) target = $region48
      $region47: #{ls_plm_forward.1} parent=31 // pred_region
        _
      $region48: #{ls_plm_forward.1} parent=31 // pred_fallthru
        _
    $region32: #{ls_plm_forward.1} parent=5 // pred_fallthru
      _
    %p532 = scmp.le.s32.totalorder 2, %s9
    // Predicated region
    $region49: #{ls_plm_forward.1} parent=5 // pred_check
      %p533 = pneg %p532
    $region50: #{ls_plm_forward.1} parent=5 // pred_check_branch
      %535 = sbr.rel (%p533) target = $region52
    $region51: #{ls_plm_forward.1} parent=5 // pred_region
      %s536 = ssub.s32 %s9, 2
      // Predicated region
      $region53: #{ls_plm_forward.1} parent=51 // pred_check
        %p537 = pneg %p118
      $region54: #{ls_plm_forward.1} parent=51 // pred_check_branch
        %539 = sbr.rel (%p537) target = $region56
      $region55: #{ls_plm_forward.1} parent=51 // pred_region
        %p540 = scmp.lt.s32.totalorder %s21, 2
        %s541 = scalar_select %p540, %s21, 2
        %s542 = scalar_lea.vmem %s3, %s541
      $region56: #{ls_plm_forward.1} parent=51 // pred_fallthru
        _
    $region52: #{ls_plm_forward.1} parent=5 // pred_fallthru
      _
  $region6: #{ls_plm_forward.1} parent=0 // loop_footer
    %s13 = sadd.s32 1, %s9
  $region7: #{ls_plm_forward.1} parent=0 // loop_footer_branch
    %8 = sbr.rel target = $region3
  $region8: #{ls_plm_forward.1} parent=0 // loop_exit
    _

</llo_original>
